<compile_context>
chip_gen: v7x
topology: tpu7x:2x2x1
jax: 0.10.0
libtpu: 0.0.40
codegen_flags: <defaults>
</compile_context>

<pallas_src>
import jax
import jax.numpy as jnp
from jax.experimental import pallas as pl
from jax.experimental.pallas import tpu as pltpu


def _coef_carry_kernel(e):
    """grid = (B, HW_tiles, O_steps), O innermost & arbitrary; coef in VMEM scratch."""
    e = float(e)

    def kernel(w_ref, rk_ref, aj_ref, ak_ref, out_ref, coef_ref):
        # w_ref    : (C, 1)           fused BN weight (resident, f32)
        # rk_ref   : (1, Ob, C, T)    relevance at BN/ReLU output, Ob classes
        # aj_ref   : (1, C, T)        BN input activations
        # ak_ref   : (1, C, T)        BN output activations (denominator)
        # out_ref  : (1, Ob, C, T)
        # coef_ref : (C, T) f32       aJ * w / z, reused across the O axis
        @pl.when(pl.program_id(2) == 0)
        def _():
            aK = ak_ref[0].astype(jnp.float32)
            aJ = aj_ref[0].astype(jnp.float32)
            # epsilon stabilizer: z = aK + e*sign(aK), sign(0) := +1
            z = aK + jnp.where(aK >= 0.0, jnp.float32(e), jnp.float32(-e))
            coef_ref[...] = (aJ * w_ref[...]) / z          # exact divide

        rK = rk_ref[0].astype(jnp.float32)                 # (Ob, C, T)
        out_ref[0] = (coef_ref[...][None] * rK).astype(out_ref.dtype)

    return kernel


def _inline_kernel(e):
    """All-parallel variant: coef recomputed per grid step (no scratch carry)."""
    e = float(e)

    def kernel(w_ref, rk_ref, aj_ref, ak_ref, out_ref):
        aK = ak_ref[0].astype(jnp.float32)
        aJ = aj_ref[0].astype(jnp.float32)
        z = aK + jnp.where(aK >= 0.0, jnp.float32(e), jnp.float32(-e))
        coef = (aJ * w_ref[...]) / z                       # (C, T)
        rK = rk_ref[0].astype(jnp.float32)                 # (Ob, C, T)
        out_ref[0] = (coef[None] * rK).astype(out_ref.dtype)

    return kernel


def _vmem_capacity_bytes():
    """Generation-aware VMEM capacity (v5e/v6e 128 MiB, v7x 64 MiB per TC)."""
    try:
        info = pltpu.get_tpu_info()
        cap = getattr(info, "vmem_capacity_bytes", None)
        if cap:
            return int(cap)
    except Exception:
        pass
    return 64 << 20            # conservative fallback (smallest across gens)


def lrp_bn_relu(rK, aJ, aK, gamma, bn_beta, running_mean, running_var, *,
                e=1e-2, bn_eps=1e-5, rule="e", alpha=2, beta=-1):
    """LRP epsilon rule through BatchNorm2d(+ReLU).

    rK: (B, O, C, H, W)  relevance at the layer output (one slice per class).
    aJ: (B, C, H, W)     BN input activations.
    aK: (B, C, H, W)     BN output activations (pre-ReLU, stored denominator).
    Returns rJ with shape (B, O, C, H, W), dtype of rK.
    """
    if rule != "e":
        raise NotImplementedError("only rule='e' is implemented")

    B, O, C, H, W = rK.shape
    HW = H * W
    out_dtype = rK.dtype
    f32 = jnp.float32

    # Fused BN per-channel weight (fused bias does not enter the epsilon rule:
    # the denominator z is taken from the stored BN output aK).
    w = (gamma.astype(f32) / jnp.sqrt(running_var.astype(f32) + bn_eps))
    w = w.reshape(C, 1)

    # Native-dtype flattening; cast to f32 happens inside the kernel.
    rK = rK.reshape(B, O, C, HW)
    aJ = aJ.reshape(B, C, HW)
    aK = aK.reshape(B, C, HW)

    rk_bytes = rK.dtype.itemsize
    a_bytes = max(aJ.dtype.itemsize, aK.dtype.itemsize)
    out_bytes = jnp.dtype(out_dtype).itemsize

    # Lane-align HW to 128 only; the tile T is picked as a divisor of hw128 so
    # no additional pad-to-T / slice-back pass is ever needed.
    hw128 = -(-HW // 128) * 128
    if hw128 != HW:
        pad = hw128 - HW
        rK = jnp.pad(rK, ((0, 0), (0, 0), (0, 0), (0, pad)))
        aJ = jnp.pad(aJ, ((0, 0), (0, 0), (0, pad)))
        # Pad aK with 1 so z = 1 + e even if e == 0: coef stays finite and the
        # padded output (aJ pad = 0) is exactly 0 before being sliced away.
        aK = jnp.pad(aK, ((0, 0), (0, 0), (0, pad)), constant_values=1.0)

    # --- generation-aware VMEM budget & per-step DMA floor ------------------
    vmem_cap = _vmem_capacity_bytes()
    budget = min(max(12 << 20, vmem_cap // 3), 28 << 20)   # double-buffered WS
    vmem_limit = int(min(vmem_cap * 3 // 4, 64 << 20))
    floor = 2 << 20                                         # >= ~2 MiB per step

    def step_bytes(T, Ob):
        return C * T * (Ob * rk_bytes + 2 * a_bytes + Ob * out_bytes)

    def working_set(T, Ob):
        # f32 coef scratch (single buffer) + double-buffered in/out blocks.
        return C * T * 4 + 2 * step_bytes(T, Ob)

    # T candidates: multiples of 128 that divide hw128 (ascending).
    n128 = hw128 // 128
    div_T = [d * 128 for d in range(1, n128 + 1) if n128 % d == 0]
    T = div_T[0]
    for t in div_T:
        if working_set(t, 1) <= budget:
            T = t

    # Fold O into the block when the per-step DMA is too small to amortize the
    # fixed grid-step cost (small C / small HW layers).
    Ob = 1
    if step_bytes(T, 1) < floor and O > 1:
        for d in range(2, O + 1):
            if O % d:
                continue
            if working_set(T, d) > budget:
                break
            Ob = d
            if step_bytes(T, d) >= floor:
                break

    # v7x megacore: keep at least 2 blocks on the parallel (b, hw-tile) axes.
    use_inline = (O // Ob) == 1
    if B * (hw128 // T) < 2:
        cands = [t for t in div_T if hw128 // t >= 2]
        if cands:
            good = [t for t in cands if step_bytes(t, Ob) >= floor]
            T = max(good) if good else max(cands)
        elif O // Ob >= 2:
            # Single (b, hw-tile): parallelize over O instead; recompute coef
            # per step (aJ/aK blocks are still resident, only extra VALU work).
            use_inline = True

    grid = (B, hw128 // T, O // Ob)

    rk_spec = pl.BlockSpec((1, Ob, C, T), lambda b, h, o: (b, o, 0, h))
    a_spec = pl.BlockSpec((1, C, T), lambda b, h, o: (b, 0, h))
    w_spec = pl.BlockSpec((C, 1), lambda b, h, o: (0, 0))

    # True HBM traffic: aJ/aK read once per batch element (reused across O),
    # rK read + rJ written once per (b, o).
    bytes_accessed = (2 * B * C * HW * a_bytes
                      + B * O * C * HW * (rk_bytes + out_bytes)
                      + C * 4)
    cost = pl.CostEstimate(
        flops=int(4 * B * C * HW + B * O * C * HW),
        transcendentals=int(B * C * HW),          # the per-(b,c,hw) divide
        bytes_accessed=int(bytes_accessed))

    common = dict(
        out_shape=jax.ShapeDtypeStruct((B, O, C, hw128), out_dtype),
        grid=grid,
        in_specs=[w_spec, rk_spec, a_spec, a_spec],
        out_specs=rk_spec,
        cost_estimate=cost,
    )

    if use_inline:
        out = pl.pallas_call(
            _inline_kernel(e),
            compiler_params=pltpu.CompilerParams(
                dimension_semantics=("parallel", "parallel", "parallel"),
                vmem_limit_bytes=vmem_limit),
            **common,
        )(w, rK, aJ, aK)
    else:
        out = pl.pallas_call(
            _coef_carry_kernel(e),
            scratch_shapes=[pltpu.VMEM((C, T), jnp.float32)],
            compiler_params=pltpu.CompilerParams(
                dimension_semantics=("parallel", "parallel", "arbitrary"),
                vmem_limit_bytes=vmem_limit),
            **common,
        )(w, rK, aJ, aK)

    if hw128 != HW:
        out = out[..., :HW]
    return out.reshape(B, O, C, H, W)


def _reference(rK, aJ, aK, gamma, running_var, bn_eps, e):
    """Pure-JAX reference mirroring the PyTorch epsilon-rule implementation."""
    w_eff = gamma / jnp.sqrt(running_var + bn_eps)
    sign = jnp.where(aK >= 0, 1.0, -1.0)
    z = aK + e * sign
    s = rK / z[:, None]
    return aJ[:, None] * w_eff[None, None, :, None, None] * s


def _make_inputs(key, B, O, C, H, W, bn_eps):
    k1, k2 = jax.random.split(key, 2)
    rK = jax.random.normal(k1, (B, O, C, H, W), jnp.float32)
    aJ = jax.random.normal(k2, (B, C, H, W), jnp.float32)
    gamma = jnp.linspace(0.5, 1.5, C, dtype=jnp.float32)
    bn_beta = jnp.linspace(-0.2, 0.2, C, dtype=jnp.float32)
    running_mean = jnp.linspace(-0.1, 0.1, C, dtype=jnp.float32)
    running_var = jnp.linspace(0.8, 1.2, C, dtype=jnp.float32)
    # aK is the stored inference-mode BN output of aJ.
    w_eff = gamma / jnp.sqrt(running_var + bn_eps)
    b_eff = bn_beta - running_mean * w_eff
    aK = aJ * w_eff[None, :, None, None] + b_eff[None, :, None, None]
    return rK, aJ, aK, gamma, bn_beta, running_mean, running_var


if __name__ == "__main__":
    bn_eps = 1e-5
    e = 1e-2
    key = jax.random.PRNGKey(0)
    k1, k2, k3 = jax.random.split(key, 3)

    # --- Test 1: small layer -> O folded into the block, all-parallel path --
    B, O, C, H, W = 2, 3, 8, 16, 16
    rK, aJ, aK, gamma, bn_beta, running_mean, running_var = _make_inputs(
        k1, B, O, C, H, W, bn_eps)
    rJ = lrp_bn_relu(rK, aJ, aK, gamma, bn_beta, running_mean, running_var,
                     e=e, bn_eps=bn_eps, rule="e")
    rJ = jax.block_until_ready(rJ)
    ref = _reference(rK, aJ, aK, gamma, running_var, bn_eps, e)
    assert rJ.shape == (B, O, C, H, W)
    assert jnp.allclose(rJ, ref, atol=1e-5, rtol=1e-5)

    # --- Test 2: non-lane-aligned HW (400 -> padded to 512, T | 512) --------
    B2, O2, C2, H2, W2 = 2, 3, 8, 20, 20
    rK2, aJ2, aK2, gamma2, bn_beta2, running_mean2, running_var2 = _make_inputs(
        k2, B2, O2, C2, H2, W2, bn_eps)
    rJ2 = lrp_bn_relu(rK2, aJ2, aK2, gamma2, bn_beta2, running_mean2,
                      running_var2, e=e, bn_eps=bn_eps, rule="e")
    rJ2 = jax.block_until_ready(rJ2)
    ref2 = _reference(rK2, aJ2, aK2, gamma2, running_var2, bn_eps, e)
    assert rJ2.shape == (B2, O2, C2, H2, W2)
    assert jnp.allclose(rJ2, ref2, atol=1e-5, rtol=1e-5)

    # --- Test 3: larger C*HW -> coef-carry path (O axis arbitrary, scratch) --
    B3, O3, C3, H3, W3 = 2, 3, 64, 64, 32       # step >= 2 MiB -> Ob = 1
    rK3, aJ3, aK3, gamma3, bn_beta3, running_mean3, running_var3 = _make_inputs(
        k3, B3, O3, C3, H3, W3, bn_eps)
    rJ3 = lrp_bn_relu(rK3, aJ3, aK3, gamma3, bn_beta3, running_mean3,
                      running_var3, e=e, bn_eps=bn_eps, rule="e")
    rJ3 = jax.block_until_ready(rJ3)
    ref3 = _reference(rK3, aJ3, aK3, gamma3, running_var3, bn_eps, e)
    assert rJ3.shape == (B3, O3, C3, H3, W3)
    assert jnp.allclose(rJ3, ref3, atol=1e-5, rtol=1e-5)

    print("KERNEL_OK")
</pallas_src>

<mosaic_0001>
module attributes {stable_mosaic.version = 11 : i64} {
  func.func @kernel(%arg0: i32, %arg1: i32, %arg2: i32, %arg3: memref<8x1xf32, #tpu.memory_space<vmem>>, %arg4: memref<1x3x8x256xf32, #tpu.memory_space<vmem>>, %arg5: memref<1x8x256xf32, #tpu.memory_space<vmem>>, %arg6: memref<1x8x256xf32, #tpu.memory_space<vmem>>, %arg7: memref<1x3x8x256xf32, #tpu.memory_space<vmem>>) attributes {dimension_semantics = [#tpu.dimension_semantics<parallel>, #tpu.dimension_semantics<parallel>, #tpu.dimension_semantics<parallel>], iteration_bounds = array<i64: 2, 1, 1>, scalar_prefetch = 0 : i64, scratch_operands = 0 : i64, tpu.core_type = #tpu.core_type<tc>, window_params = [{pipeline_mode = #tpu.pipeline_mode<synchronous>, transform_indices = @transform_0, window_bounds = array<i64: 8, 1>}, {transform_indices = @transform_1, window_bounds = array<i64: 1, 3, 8, 256>}, {transform_indices = @transform_2, window_bounds = array<i64: 1, 8, 256>}, {transform_indices = @transform_3, window_bounds = array<i64: 1, 8, 256>}, {transform_indices = @transform_4, window_bounds = array<i64: 1, 3, 8, 256>}]} {
    %c0 = arith.constant 0 : index
    %c0_0 = arith.constant 0 : index
    %c0_1 = arith.constant 0 : index
    %0 = vector.load %arg6[%c0, %c0_0, %c0_1] : memref<1x8x256xf32, #tpu.memory_space<vmem>>, vector<1x8x256xf32>
    %1 = vector.shape_cast %0 : vector<1x8x256xf32> to vector<8x256xf32>
    %c0_2 = arith.constant 0 : index
    %c0_3 = arith.constant 0 : index
    %c0_4 = arith.constant 0 : index
    %2 = vector.load %arg5[%c0_2, %c0_3, %c0_4] : memref<1x8x256xf32, #tpu.memory_space<vmem>>, vector<1x8x256xf32>
    %3 = vector.shape_cast %2 : vector<1x8x256xf32> to vector<8x256xf32>
    %cst = arith.constant 0.000000e+00 : f32
    %4 = vector.broadcast %cst : f32 to vector<8x256xf32>
    %5 = arith.cmpf oge, %1, %4 : vector<8x256xf32>
    %cst_5 = arith.constant 0.00999999977 : f32
    %cst_6 = arith.constant -0.00999999977 : f32
    %6 = vector.broadcast %cst_5 : f32 to vector<8x256xf32>
    %7 = vector.broadcast %cst_6 : f32 to vector<8x256xf32>
    %8 = arith.select %5, %6, %7 : vector<8x256xi1>, vector<8x256xf32>
    %9 = arith.addf %1, %8 : vector<8x256xf32>
    %c0_7 = arith.constant 0 : index
    %c0_8 = arith.constant 0 : index
    %10 = vector.load %arg3[%c0_7, %c0_8] : memref<8x1xf32, #tpu.memory_space<vmem>>, vector<8x1xf32>
    %11 = vector.broadcast %10 : vector<8x1xf32> to vector<8x256xf32>
    %12 = arith.mulf %3, %11 : vector<8x256xf32>
    %13 = arith.divf %12, %9 : vector<8x256xf32>
    %c0_9 = arith.constant 0 : index
    %c0_10 = arith.constant 0 : index
    %c0_11 = arith.constant 0 : index
    %c0_12 = arith.constant 0 : index
    %14 = vector.load %arg4[%c0_9, %c0_10, %c0_11, %c0_12] : memref<1x3x8x256xf32, #tpu.memory_space<vmem>>, vector<1x3x8x256xf32>
    %15 = vector.shape_cast %14 : vector<1x3x8x256xf32> to vector<3x8x256xf32>
    %16 = vector.shape_cast %13 : vector<8x256xf32> to vector<1x8x256xf32>
    %17 = vector.broadcast %16 : vector<1x8x256xf32> to vector<3x8x256xf32>
    %18 = arith.mulf %17, %15 : vector<3x8x256xf32>
    %c0_13 = arith.constant 0 : index
    %c0_14 = arith.constant 0 : index
    %c0_15 = arith.constant 0 : index
    %c0_16 = arith.constant 0 : index
    %19 = vector.load %arg7[%c0_13, %c0_14, %c0_15, %c0_16] : memref<1x3x8x256xf32, #tpu.memory_space<vmem>>, vector<1x3x8x256xf32>
    %20 = vector.shape_cast %19 : vector<1x3x8x256xf32> to vector<3x8x256xf32>
    %21 = vector.shape_cast %18 : vector<3x8x256xf32> to vector<1x3x8x256xf32>
    tpu.vector_store %arg7[%c0_13, %c0_14, %c0_15, %c0_16], %21 {strides = array<i32>} : memref<1x3x8x256xf32, #tpu.memory_space<vmem>>, vector<1x3x8x256xf32>,
    return
  }
  func.func @transform_0(%arg0: i32, %arg1: i32, %arg2: i32) -> (i32, i32) {
    %c0_i32 = arith.constant 0 : i32
    %c0_i32_0 = arith.constant 0 : i32
    %c0_i32_1 = arith.constant 0 : i32
    return %c0_i32, %c0_i32_0 : i32, i32
  }
  func.func @transform_1(%arg0: i32, %arg1: i32, %arg2: i32) -> (i32, i32, i32, i32) {
    %c0_i32 = arith.constant 0 : i32
    %c0_i32_0 = arith.constant 0 : i32
    return %arg0, %arg2, %c0_i32, %arg1 : i32, i32, i32, i32
  }
  func.func @transform_2(%arg0: i32, %arg1: i32, %arg2: i32) -> (i32, i32, i32) {
    %c0_i32 = arith.constant 0 : i32
    %c0_i32_0 = arith.constant 0 : i32
    return %arg0, %c0_i32, %arg1 : i32, i32, i32
  }
  func.func @transform_3(%arg0: i32, %arg1: i32, %arg2: i32) -> (i32, i32, i32) {
    %c0_i32 = arith.constant 0 : i32
    %c0_i32_0 = arith.constant 0 : i32
    return %arg0, %c0_i32, %arg1 : i32, i32, i32
  }
  func.func @transform_4(%arg0: i32, %arg1: i32, %arg2: i32) -> (i32, i32, i32, i32) {
    %c0_i32 = arith.constant 0 : i32
    %c0_i32_0 = arith.constant 0 : i32
    return %arg0, %arg2, %c0_i32, %arg1 : i32, i32, i32, i32
  }
}

</mosaic_0001>

<llo_original>
// kernel: tpu_custom_call.1
$region0: #{tpu_custom_call.1}
  #allocation0 [shape = 'u32[]', space=smem, size = 0x4, offset = 0x4, fixed_abs, tag = 'smem constant byte address 0x4 - core index']
  #allocation1 [shape = 'u32[144,128]{1,0:T(1,128)}', space=vmem, size = 0x12000, scoped, tag = 'internal scratch']
  %s0 = inlined_call_operand.vmem [shape: f32[8,1], index: 0, kind: input, shape index: {}]
  %s1 = inlined_call_operand.hbm [shape: f32[2,3,8,256], index: 1, kind: input, shape index: {}]
  %s2 = inlined_call_operand.hbm [shape: f32[2,8,256], index: 2, kind: input, shape index: {}]
  %s3 = inlined_call_operand.hbm [shape: f32[2,8,256], index: 3, kind: input, shape index: {}]
  %s4 = inlined_call_operand.hbm [shape: f32[2,3,8,256], index: 4, kind: output, shape index: {}]
  %s5 = sld [smem:[#allocation0]]
  $region61: #{tpu_custom_call.1} parent=0
    _
  %s7 = ssub.s32 1, %s5
  %s8 = scalar_select 0, %s7, %s5
  $region1: #{tpu_custom_call.1} parent=0
    #allocation2 [shape = 'u8[49152]{0}', space=vmem, size = 0xc000, scoped, tag = 'input window, operand 1']
    #allocation3 [shape = 's32[2]{0}', space=sflag, size = 0x8, scoped, tag = 'scoped memory for tpu_custom_call.1']
    #allocation4 [shape = 's32[2]{0}', space=sflag, size = 0x8, scoped, tag = 'scoped memory for tpu_custom_call.1']
    #allocation5 [shape = 'u8[16384]{0}', space=vmem, size = 0x4000, scoped, tag = 'input window, operand 2']
    #allocation6 [shape = 's32[2]{0}', space=sflag, size = 0x8, scoped, tag = 'scoped memory for tpu_custom_call.1']
    #allocation7 [shape = 'u8[16384]{0}', space=vmem, size = 0x4000, scoped, tag = 'input window, operand 3']
    #allocation8 [shape = 'u8[49152]{0}', space=vmem, size = 0xc000, scoped, tag = 'output window, operand 0']
    %9 = vsyncpa [#allocation3], 0
    %s10 = scalar_lea.sflag [#allocation3], 1
    %11 = vsyncpa %s10, 0
    %12 = vsyncpa [#allocation6], 0
    %s13 = scalar_lea.sflag [#allocation6], 1
    %14 = vsyncpa %s13, 0
    %15 = vsyncpa [#allocation4], 0
    %s16 = scalar_lea.sflag [#allocation4], 1
    %17 = vsyncpa %s16, 0
    loop: start=0, step=1, limit=4
    $region2: #{tpu_custom_call.1} parent=1 // loop_pre_header
      _
    $region3: #{tpu_custom_call.1} parent=1 // loop_header
      %s19 = sphi 0, %s23
      %p20 = scmp.ge.s32.totalorder %s19, 4
      %s26 = sphi 0, %s45
      %s27 = sphi 0, %s41
      %s28 = sphi 0, %s37
      %s29 = sphi 0, %s26
      %s30 = sphi 0, %s27
      %s31 = sphi 0, %s28
      %s32 = sphi 0, %s29
      %s33 = sphi 0, %s30
      %s34 = sphi 0, %s31
      %s46 = sphi 0, %s46
      %s48 = sphi 0, %s46
      %s49 = sphi 0, %s48
      %s63 = sphi 0, %s49
      %s73 = sphi 0, %s75
      %s76 = sphi 0, %s73
      %s77 = sphi 0, %s76
      %s93 = sphi 0, %s77
      %s101 = sphi 0, %s103
      %s104 = sphi 0, %s101
      %s105 = sphi 0, %s104
      %s121 = sphi 0, %s105
      %s129 = sphi 0, %s131
      %s132 = sphi 0, %s129
      %s133 = sphi 0, %s132
      %s149 = sphi 0, %s133
      %s159 = sphi 0, %s161
      %s162 = sphi 0, %s159
      %s163 = sphi 0, %s162
      %s179 = sphi 0, %s163
    $region4: #{tpu_custom_call.1} parent=1 // loop_header_branch
      %22 = sbr.rel (%p20) target = $region8
    $region5: #{tpu_custom_call.1} parent=1 // loop_body
      %s24 = ssub.s32 %s19, 1
      %s25 = ssub.s32 %s19, 2
      %s35 = sadd.s32 1, %s28
      %p36 = scmp.ge.s32.totalorder %s35, 1
      %s37 = scalar_select %p36, 0, %s35
      %s38 = sadd.s32 1, %s27
      %s39 = scalar_select %p36, %s38, %s27
      %p40 = scmp.ge.s32.totalorder %s39, 1
      %s41 = scalar_select %p40, 0, %s39
      %s42 = sadd.s32 1, %s26
      %s43 = scalar_select %p40, %s42, %s26
      %p44 = scmp.ge.s32.totalorder %s43, 2
      %s45 = scalar_select %p44, 0, %s43
      %s47 = sadd.s32 %s46, 1
      %p50 = scmp.eq.s32.totalorder %s19, 1
      %p51 = scmp.ne.s32.totalorder %s46, %s48
      %p52 = scmp.eq.s32.totalorder %s19, 0
      %p53 = por %p51, %p52
      %p54 = scmp.ne.s32.totalorder %s46, %s48
      %p55 = scmp.eq.s32.totalorder %s24, 1
      %p56 = por %p54, %p55
      %p57 = scmp.ne.s32.totalorder %s48, %s49
      %p58 = scmp.eq.s32.totalorder %s24, 0
      %p59 = por %p57, %p58
      %p60 = scmp.ne.s32.totalorder %s48, %s49
      %p61 = scmp.eq.s32.totalorder %s25, 1
      %p62 = por %p60, %p61
      %p64 = scmp.ne.s32.totalorder %s49, %s63
      %p65 = scmp.eq.s32.totalorder %s25, 0
      %p66 = por %p64, %p65
      %s67 = ssub.s32 %s26, %s45
      %s68 = ssub.s32 %s28, %s37
      %s69 = sor.u32 %s67, %s68
      %s70 = ssub.s32 %s27, %s41
      %s71 = sor.u32 %s69, %s70
      %p72 = scmp.eq.s32.totalorder %s71, 0
      %s74 = sadd.s32 %s73, 1
      %s75 = scalar_select %p72, %s73, %s74
      %p78 = pneg %p72
      %p79 = scmp.eq.s32.totalorder %s19, 1
      %p80 = por %p78, %p79
      %p81 = scmp.ne.s32.totalorder %s73, %s76
      %p82 = scmp.eq.s32.totalorder %s19, 0
      %p83 = por %p81, %p82
      %p84 = scmp.ne.s32.totalorder %s73, %s76
      %p85 = scmp.eq.s32.totalorder %s24, 1
      %p86 = por %p84, %p85
      %p87 = scmp.ne.s32.totalorder %s76, %s77
      %p88 = scmp.eq.s32.totalorder %s24, 0
      %p89 = por %p87, %p88
      %p90 = scmp.ne.s32.totalorder %s76, %s77
      %p91 = scmp.eq.s32.totalorder %s25, 1
      %p92 = por %p90, %p91
      %p94 = scmp.ne.s32.totalorder %s77, %s93
      %p95 = scmp.eq.s32.totalorder %s25, 0
      %p96 = por %p94, %p95
      %s97 = ssub.s32 %s26, %s45
      %s98 = ssub.s32 %s27, %s41
      %s99 = sor.u32 %s97, %s98
      %p100 = scmp.eq.s32.totalorder %s99, 0
      %s102 = sadd.s32 %s101, 1
      %s103 = scalar_select %p100, %s101, %s102
      %p106 = pneg %p100
      %p107 = scmp.eq.s32.totalorder %s19, 1
      %p108 = por %p106, %p107
      %p109 = scmp.ne.s32.totalorder %s101, %s104
      %p110 = scmp.eq.s32.totalorder %s19, 0
      %p111 = por %p109, %p110
      %p112 = scmp.ne.s32.totalorder %s101, %s104
      %p113 = scmp.eq.s32.totalorder %s24, 1
      %p114 = por %p112, %p113
      %p115 = scmp.ne.s32.totalorder %s104, %s105
      %p116 = scmp.eq.s32.totalorder %s24, 0
      %p117 = por %p115, %p116
      %p118 = scmp.ne.s32.totalorder %s104, %s105
      %p119 = scmp.eq.s32.totalorder %s25, 1
      %p120 = por %p118, %p119
      %p122 = scmp.ne.s32.totalorder %s105, %s121
      %p123 = scmp.eq.s32.totalorder %s25, 0
      %p124 = por %p122, %p123
      %s125 = ssub.s32 %s26, %s45
      %s126 = ssub.s32 %s27, %s41
      %s127 = sor.u32 %s125, %s126
      %p128 = scmp.eq.s32.totalorder %s127, 0
      %s130 = sadd.s32 %s129, 1
      %s131 = scalar_select %p128, %s129, %s130
      %p134 = pneg %p128
      %p135 = scmp.eq.s32.totalorder %s19, 1
      %p136 = por %p134, %p135
      %p137 = scmp.ne.s32.totalorder %s129, %s132
      %p138 = scmp.eq.s32.totalorder %s19, 0
      %p139 = por %p137, %p138
      %p140 = scmp.ne.s32.totalorder %s129, %s132
      %p141 = scmp.eq.s32.totalorder %s24, 1
      %p142 = por %p140, %p141
      %p143 = scmp.ne.s32.totalorder %s132, %s133
      %p144 = scmp.eq.s32.totalorder %s24, 0
      %p145 = por %p143, %p144
      %p146 = scmp.ne.s32.totalorder %s132, %s133
      %p147 = scmp.eq.s32.totalorder %s25, 1
      %p148 = por %p146, %p147
      %p150 = scmp.ne.s32.totalorder %s133, %s149
      %p151 = scmp.eq.s32.totalorder %s25, 0
      %p152 = por %p150, %p151
      %s153 = ssub.s32 %s26, %s45
      %s154 = ssub.s32 %s28, %s37
      %s155 = sor.u32 %s153, %s154
      %s156 = ssub.s32 %s27, %s41
      %s157 = sor.u32 %s155, %s156
      %p158 = scmp.eq.s32.totalorder %s157, 0
      %s160 = sadd.s32 %s159, 1
      %s161 = scalar_select %p158, %s159, %s160
      %p164 = pneg %p158
      %p165 = scmp.eq.s32.totalorder %s19, 1
      %p166 = por %p164, %p165
      %p167 = scmp.ne.s32.totalorder %s159, %s162
      %p168 = scmp.eq.s32.totalorder %s19, 0
      %p169 = por %p167, %p168
      %p170 = scmp.ne.s32.totalorder %s159, %s162
      %p171 = scmp.eq.s32.totalorder %s24, 1
      %p172 = por %p170, %p171
      %p173 = scmp.ne.s32.totalorder %s162, %s163
      %p174 = scmp.eq.s32.totalorder %s24, 0
      %p175 = por %p173, %p174
      %p176 = scmp.ne.s32.totalorder %s162, %s163
      %p177 = scmp.eq.s32.totalorder %s25, 1
      %p178 = por %p176, %p177
      %p180 = scmp.ne.s32.totalorder %s163, %s179
      %p181 = scmp.eq.s32.totalorder %s25, 0
      %p182 = por %p180, %p181
      %p183 = scmp.le.s32.totalorder 1, %s19
      %p184 = scmp.lt.s32.totalorder %s19, 3
      %p185 = pnand %p183, %p184
      %p186 = pneg %p185
      // Predicated region
      $region9: #{tpu_custom_call.1} parent=5 // pred_check
        _
      $region10: #{tpu_custom_call.1} parent=5 // pred_check_branch
        %188 = sbr.rel (%p185) target = $region12
      $region11: #{tpu_custom_call.1} parent=5 // pred_region
        %s189 = ssub.s32 %s19, 1
        // Predicated region
        $region13: #{tpu_custom_call.1} parent=11 // pred_check
          %p190 = pneg %p59
        $region14: #{tpu_custom_call.1} parent=11 // pred_check_branch
          %192 = sbr.rel (%p190) target = $region16
        $region15: #{tpu_custom_call.1} parent=11 // pred_region
          _
        $region16: #{tpu_custom_call.1} parent=11 // pred_fallthru
          _
      $region12: #{tpu_custom_call.1} parent=5 // pred_fallthru
        _
      %p193 = scmp.lt.s32.totalorder %s19, 2
      // Predicated region
      $region17: #{tpu_custom_call.1} parent=5 // pred_check
        %p194 = pneg %p193
      $region18: #{tpu_custom_call.1} parent=5 // pred_check_branch
        %196 = sbr.rel (%p194) target = $region20
      $region19: #{tpu_custom_call.1} parent=5 // pred_region
        // Predicated region
        $region21: #{tpu_custom_call.1} parent=19 // pred_check
          %p197 = pneg %p83
        $region22: #{tpu_custom_call.1} parent=19 // pred_check_branch
          %199 = sbr.rel (%p197) target = $region24
        $region23: #{tpu_custom_call.1} parent=19 // pred_region
          %s200 = sand.u32 %s73, 1
          %s201 = scalar_lea.sflag [#allocation3], %s200
          %s202 = sand.u32 %s73, 1
          %s203 = smul.addr %s202, 48
          %s204 = scalar_lea.vmem [#allocation2], %s203
          %s205 = smul.u32 3, %s28
          %s206 = smul.u32 2, %s27
          %s208 = ssub.s32 768, 768
          %209 = vsyncadd %s201, %s208
          %s210 = smul.addr %s205, 2
          %s211 = sadd.s32 %s206, %s210
          %s212 = smul.addr %s26, 6
          %s213 = sadd.s32 %s211, %s212
          %s214 = smul.addr %s213, 128
          %s215 = scalar_lea.hbm %s1, %s214
          %s216 = sshll.u32 %s204, 4
          %s217 = int_to_ptr.vmem [resolvable:$true] %s216
          %222 = dma.hbm_to_vmem [thread:$0]  %s215, 768, %s217, %s201, 256, 256, 16
        $region24: #{tpu_custom_call.1} parent=19 // pred_fallthru
          _
        // Predicated region
        $region25: #{tpu_custom_call.1} parent=19 // pred_check
          %p223 = pneg %p111
        $region26: #{tpu_custom_call.1} parent=19 // pred_check_branch
          %225 = sbr.rel (%p223) target = $region28
        $region27: #{tpu_custom_call.1} parent=19 // pred_region
          %s226 = sand.u32 %s19, 1
          %s227 = scalar_lea.sflag [#allocation6], %s226
          %s228 = sand.u32 %s101, 1
          %s229 = smul.addr %s228, 16
          %s230 = scalar_lea.vmem [#allocation5], %s229
          %s231 = smul.u32 2, %s27
          %s233 = ssub.s32 256, 256
          %234 = vsyncadd %s227, %s233
          %s235 = smul.addr %s26, 2
          %s236 = sadd.s32 %s231, %s235
          %s237 = smul.addr %s236, 128
          %s238 = scalar_lea.hbm %s2, %s237
          %s240 = sshll.u32 %s230, 4
          %s241 = int_to_ptr.vmem [resolvable:$true] %s240
          %243 = dma.hbm_to_vmem [thread:$0]  %s238, 256, %s241, %s227
        $region28: #{tpu_custom_call.1} parent=19 // pred_fallthru
          _
        // Predicated region
        $region29: #{tpu_custom_call.1} parent=19 // pred_check
          %p244 = pneg %p139
        $region30: #{tpu_custom_call.1} parent=19 // pred_check_branch
          %246 = sbr.rel (%p244) target = $region32
        $region31: #{tpu_custom_call.1} parent=19 // pred_region
          %s247 = sand.u32 %s19, 1
          %s248 = scalar_lea.sflag [#allocation6], %s247
          %s249 = sand.u32 %s129, 1
          %s250 = smul.addr %s249, 16
          %s251 = scalar_lea.vmem [#allocation7], %s250
          %s252 = smul.u32 2, %s27
          %s254 = ssub.s32 256, 256
          %255 = vsyncadd %s248, %s254
          %s256 = smul.addr %s26, 2
          %s257 = sadd.s32 %s252, %s256
          %s258 = smul.addr %s257, 128
          %s259 = scalar_lea.hbm %s3, %s258
          %s261 = sshll.u32 %s251, 4
          %s262 = int_to_ptr.vmem [resolvable:$true] %s261
          %264 = dma.hbm_to_vmem [thread:$0]  %s259, 256, %s262, %s248
        $region32: #{tpu_custom_call.1} parent=19 // pred_fallthru
          _
      $region20: #{tpu_custom_call.1} parent=5 // pred_fallthru
        _
      %p265 = scmp.le.s32.totalorder 1, %s19
      %p266 = scmp.lt.s32.totalorder %s19, 3
      %p267 = pnand %p265, %p266
      %p268 = pneg %p267
      // Predicated region
      $region33: #{tpu_custom_call.1} parent=5 // pred_check
        _
      $region34: #{tpu_custom_call.1} parent=5 // pred_check_branch
        %270 = sbr.rel (%p267) target = $region36
      $region35: #{tpu_custom_call.1} parent=5 // pred_region
        %s271 = ssub.s32 %s19, 1
        %s272 = sand.u32 %s76, 1
        %s273 = scalar_lea.sflag [#allocation3], %s272
        %s274 = sand.u32 %s76, 1
        %s275 = smul.addr %s274, 48
        %s276 = scalar_lea.vmem [#allocation2], %s275
        // Predicated region
        $region37: #{tpu_custom_call.1} parent=35 // pred_check
          %p277 = pneg %p89
        $region38: #{tpu_custom_call.1} parent=35 // pred_check_branch
          %279 = sbr.rel (%p277) target = $region40
        $region39: #{tpu_custom_call.1} parent=35 // pred_region
          %280 = dma.done %s273, 768
        $region40: #{tpu_custom_call.1} parent=35 // pred_fallthru
          _
        %s281 = sand.u32 %s24, 1
        %s282 = scalar_lea.sflag [#allocation6], %s281
        %s283 = sand.u32 %s104, 1
        %s284 = smul.addr %s283, 16
        %s285 = scalar_lea.vmem [#allocation5], %s284
        // Predicated region
        $region41: #{tpu_custom_call.1} parent=35 // pred_check
          %p286 = pneg %p117
        $region42: #{tpu_custom_call.1} parent=35 // pred_check_branch
          %288 = sbr.rel (%p286) target = $region44
        $region43: #{tpu_custom_call.1} parent=35 // pred_region
          %289 = dma.done %s282, 256
        $region44: #{tpu_custom_call.1} parent=35 // pred_fallthru
          _
        %s290 = sand.u32 %s24, 1
        %s291 = scalar_lea.sflag [#allocation6], %s290
        %s292 = sand.u32 %s132, 1
        %s293 = smul.addr %s292, 16
        %s294 = scalar_lea.vmem [#allocation7], %s293
        // Predicated region
        $region45: #{tpu_custom_call.1} parent=35 // pred_check
          %p295 = pneg %p145
        $region46: #{tpu_custom_call.1} parent=35 // pred_check_branch
          %297 = sbr.rel (%p295) target = $region48
        $region47: #{tpu_custom_call.1} parent=35 // pred_region
          %298 = dma.done %s291, 256
        $region48: #{tpu_custom_call.1} parent=35 // pred_fallthru
          _
        %p299 = pneg %p59
        %p300 = pneg %p56
        %s301 = sand.u32 %s76, 1
        %s302 = scalar_lea.sflag [#allocation3], %s301
        %s303 = sand.u32 %s76, 1
        %s304 = smul.addr %s303, 48
        %s305 = scalar_lea.vmem [#allocation2], %s304
        %p306 = pneg %p89
        %p307 = pneg %p86
        %s308 = sand.u32 %s24, 1
        %s309 = scalar_lea.sflag [#allocation6], %s308
        %s310 = sand.u32 %s104, 1
        %s311 = smul.addr %s310, 16
        %s312 = scalar_lea.vmem [#allocation5], %s311
        %p313 = pneg %p117
        %p314 = pneg %p114
        %s315 = sand.u32 %s24, 1
        %s316 = scalar_lea.sflag [#allocation6], %s315
        %s317 = sand.u32 %s132, 1
        %s318 = smul.addr %s317, 16
        %s319 = scalar_lea.vmem [#allocation7], %s318
        %p320 = pneg %p145
        %p321 = pneg %p142
        %p322 = pneg %p175
        %p323 = pneg %p172
        %s324 = sand.u32 %s162, 1
        %s325 = scalar_lea.sflag [#allocation4], %s324
        %s326 = sand.u32 %s162, 1
        %s327 = smul.addr %s326, 48
        %s328 = scalar_lea.vmem [#allocation8], %s327
        %s329 = smul.u32 3, %s31
        %s330 = smul.u32 2, %s30
        %s331 = smul.u32 2, %s30
        %s332 = smul.u32 2, %s30
        %s333 = smul.u32 3, %s31
        %s334 = smul.u32 2, %s30
        %v335 = vld [vmem:[%s294] sm:$0xff]
        %v336 = vld [vmem:[%s294 + $0x8] sm:$0xff]
        %v337 = vld [vmem:[%s285] sm:$0xff]
        %v338 = vld [vmem:[%s285 + $0x8] sm:$0xff]
        %vm339 = vcmp.ge.f32.partialorder %v335, 0.0
        %vm340 = vcmp.ge.f32.partialorder %v336, 0.0
        %v341 = vsel %vm339, 0.01, -0.01
        %v342 = vsel %vm340, 0.01, -0.01
        %v343 = vadd.f32 %v335, %v341
        %v344 = vadd.f32 %v336, %v342
        %v345 = vld [vmem:[%s0] sm:$0xff]
        %347 = vset.pattern.permute.xlu0 0
        %348 = vperm.xlu0 %347, %v345
        %v349 = vpop.permute.xlu0 %348
        %v351 = vmul.f32 %v337, %v349
        %v352 = vmul.f32 %v338, %v349
        %v353 = vrcp.pop %v343
        %v354 = vmul.f32 %v351, %v353
        %v355 = vrcp.pop %v344
        %v356 = vmul.f32 %v352, %v355
        %v357 = vld [vmem:[%s276] sm:$0xff]
        %v358 = vld [vmem:[%s276 + $0x8] sm:$0xff]
        %v359 = vld [vmem:[%s276 + $0x10] sm:$0xff]
        %v360 = vld [vmem:[%s276 + $0x18] sm:$0xff]
        %v361 = vld [vmem:[%s276 + $0x20] sm:$0xff]
        %v362 = vld [vmem:[%s276 + $0x28] sm:$0xff]
        %v363 = vmul.f32 %v354, %v357
        %v364 = vmul.f32 %v356, %v358
        %v365 = vmul.f32 %v354, %v359
        %v366 = vmul.f32 %v356, %v360
        %v367 = vmul.f32 %v354, %v361
        %v368 = vmul.f32 %v356, %v362
        %369 = vst [vmem:[%s328] sm:$0xff] %v363
        %370 = vst [vmem:[%s328 + $0x8] sm:$0xff] %v364
        %371 = vst [vmem:[%s328 + $0x10] sm:$0xff] %v365
        %372 = vst [vmem:[%s328 + $0x18] sm:$0xff] %v366
        %373 = vst [vmem:[%s328 + $0x20] sm:$0xff] %v367
        %374 = vst [vmem:[%s328 + $0x28] sm:$0xff] %v368
        %s375 = sand.u32 %s162, 1
        %s376 = scalar_lea.sflag [#allocation4], %s375
        %s377 = sand.u32 %s162, 1
        %s378 = smul.addr %s377, 48
        %s379 = scalar_lea.vmem [#allocation8], %s378
        // Predicated region
        $region49: #{tpu_custom_call.1} parent=35 // pred_check
          %p380 = pneg %p172
        $region50: #{tpu_custom_call.1} parent=35 // pred_check_branch
          %382 = sbr.rel (%p380) target = $region52
        $region51: #{tpu_custom_call.1} parent=35 // pred_region
          %s383 = smul.u32 3, %s31
          %s384 = smul.u32 2, %s30
          %s386 = ssub.s32 768, 768
          %387 = vsyncadd %s376, %s386
          %s388 = smul.addr %s383, 2
          %s389 = sadd.s32 %s384, %s388
          %s390 = smul.addr %s29, 6
          %s391 = sadd.s32 %s389, %s390
          %s392 = smul.addr %s391, 128
          %s393 = scalar_lea.hbm %s4, %s392
          %s394 = sshll.u32 %s379, 4
          %s395 = int_to_ptr.vmem [resolvable:$true] %s394
          %400 = dma.vmem_to_hbm [thread:$0]  %s395, 768, %s393, %s376, 256, 256, 16
        $region52: #{tpu_custom_call.1} parent=35 // pred_fallthru
          _
      $region36: #{tpu_custom_call.1} parent=5 // pred_fallthru
        _
      %p401 = scmp.le.s32.totalorder 2, %s19
      // Predicated region
      $region53: #{tpu_custom_call.1} parent=5 // pred_check
        %p402 = pneg %p401
      $region54: #{tpu_custom_call.1} parent=5 // pred_check_branch
        %404 = sbr.rel (%p402) target = $region56
      $region55: #{tpu_custom_call.1} parent=5 // pred_region
        %s405 = ssub.s32 %s19, 2
        // Predicated region
        $region57: #{tpu_custom_call.1} parent=55 // pred_check
          %p406 = pneg %p178
        $region58: #{tpu_custom_call.1} parent=55 // pred_check_branch
          %408 = sbr.rel (%p406) target = $region60
        $region59: #{tpu_custom_call.1} parent=55 // pred_region
          %s409 = sand.u32 %s163, 1
          %s410 = scalar_lea.sflag [#allocation4], %s409
          %s411 = sand.u32 %s163, 1
          %s412 = smul.addr %s411, 48
          %s413 = scalar_lea.vmem [#allocation8], %s412
          %414 = dma.done %s410, 768
        $region60: #{tpu_custom_call.1} parent=55 // pred_fallthru
          _
      $region56: #{tpu_custom_call.1} parent=5 // pred_fallthru
        _
    $region6: #{tpu_custom_call.1} parent=1 // loop_footer
      %s23 = sadd.s32 1, %s19
    $region7: #{tpu_custom_call.1} parent=1 // loop_footer_branch
      %18 = sbr.rel target = $region3
    $region8: #{tpu_custom_call.1} parent=1 // loop_exit
      _
    %415 = vsyncpa [#allocation3], 1
    %s416 = scalar_lea.sflag [#allocation3], 1
    %417 = vsyncpa %s416, 1
    %418 = vsyncpa [#allocation6], 1
    %s419 = scalar_lea.sflag [#allocation6], 1
    %420 = vsyncpa %s419, 1
    %421 = vsyncpa [#allocation4], 1
    %s422 = scalar_lea.sflag [#allocation4], 1
    %423 = vsyncpa %s422, 1

</llo_original>
